<compile_context>
chip_gen: v5e
topology: v5e:2x2
jax: 0.10.0
libtpu: 0.0.40
codegen_flags: <defaults>
</compile_context>

<pallas_src>
import jax
import jax.numpy as jnp
from jax.experimental import pallas as pl
from jax.experimental.pallas import tpu as pltpu

_LANES = 128


def _copy_kernel(*refs):
    # refs = (*in_refs, *out_refs): identity pass-through for each pair.
    k = len(refs) // 2
    for i in range(k):
        refs[k + i][...] = refs[i][...]


def _to_lane_dense_2d(h):
    """Reshape to a 2-D slab with a lane-dense (128) last dim when possible."""
    total = h.size
    if total % _LANES == 0:
        return jnp.reshape(h, (total // _LANES, _LANES))
    # Fallback: single-row slab (block == full array, still legal).
    return jnp.reshape(h, (1, total))


def _fused_identity(h_sel):
    """Identity copy of all selected tensors through a single pallas_call."""
    k = len(h_sel)
    slabs = [_to_lane_dense_2d(h) for h in h_sel]
    out = pl.pallas_call(
        _copy_kernel,
        out_shape=tuple(
            jax.ShapeDtypeStruct(s.shape, s.dtype) for s in slabs
        ),
        # No grid: one invocation, whole-array blocks resident in VMEM.
        in_specs=[
            pl.BlockSpec(memory_space=pltpu.MemorySpace.VMEM) for _ in slabs
        ],
        out_specs=[
            pl.BlockSpec(memory_space=pltpu.MemorySpace.VMEM) for _ in slabs
        ],
        # Output i aliases input i -> no extra HBM allocation / round-trip
        # when the caller donates the buffers under jit.
        input_output_aliases={i: i for i in range(k)},
    )(*slabs)
    return [jnp.reshape(o, h.shape) for o, h in zip(out, h_sel)]


def se_op(primitives, h_list):
    """JAX/Pallas equivalent of SeOp.forward.

    For each (op, h) pair, if op == 'true' the tensor h is passed through
    (all selected tensors share ONE fused Pallas identity kernel call).
    Selection over primitive strings is Python control flow and therefore
    stays outside the kernel (and outside jit).
    """
    h_sel = [h for op, h in zip(primitives, h_list) if op == 'true']
    if not h_sel:
        return []
    return _fused_identity(h_sel)


if __name__ == "__main__":
    key = jax.random.PRNGKey(0)

    # Small NCHW inputs consistent with typical conv feature maps.
    primitives = ['true', 'false', 'true', 'false']
    shapes = [(2, 4, 16, 16)] * len(primitives)

    h_list = []
    for shp in shapes:
        key, sub = jax.random.split(key)
        h_list.append(jax.random.normal(sub, shp, dtype=jnp.float32))

    out = se_op(primitives, h_list)
    out = [jax.block_until_ready(o) for o in out]

    # Reference semantics check: output is exactly the selected inputs.
    expected = [h for op, h in zip(primitives, h_list) if op == 'true']
    assert len(out) == len(expected)
    for o, e in zip(out, expected):
        assert o.shape == e.shape and o.dtype == e.dtype
        assert bool(jnp.all(o == e))

    print("KERNEL_OK")
</pallas_src>

<mosaic_0001>
module attributes {stable_mosaic.version = 11 : i64} {
  func.func @_copy_kernel(%arg0: memref<16x128xf32, #tpu.memory_space<vmem>>, %arg1: memref<16x128xf32, #tpu.memory_space<vmem>>, %arg2: memref<16x128xf32, #tpu.memory_space<vmem>>, %arg3: memref<16x128xf32, #tpu.memory_space<vmem>>) attributes {dimension_semantics = [], scalar_prefetch = 0 : i64, scratch_operands = 0 : i64, tpu.core_type = #tpu.core_type<tc>} {
    %c0 = arith.constant 0 : index
    %c0_0 = arith.constant 0 : index
    %0 = vector.load %arg0[%c0, %c0_0] : memref<16x128xf32, #tpu.memory_space<vmem>>, vector<16x128xf32>
    %c0_1 = arith.constant 0 : index
    %c0_2 = arith.constant 0 : index
    %1 = vector.load %arg2[%c0_1, %c0_2] : memref<16x128xf32, #tpu.memory_space<vmem>>, vector<16x128xf32>
    tpu.vector_store %arg2[%c0_1, %c0_2], %0 {strides = array<i32>} : memref<16x128xf32, #tpu.memory_space<vmem>>, vector<16x128xf32>,
    %c0_3 = arith.constant 0 : index
    %c0_4 = arith.constant 0 : index
    %2 = vector.load %arg1[%c0_3, %c0_4] : memref<16x128xf32, #tpu.memory_space<vmem>>, vector<16x128xf32>
    %c0_5 = arith.constant 0 : index
    %c0_6 = arith.constant 0 : index
    %3 = vector.load %arg3[%c0_5, %c0_6] : memref<16x128xf32, #tpu.memory_space<vmem>>, vector<16x128xf32>
    tpu.vector_store %arg3[%c0_5, %c0_6], %2 {strides = array<i32>} : memref<16x128xf32, #tpu.memory_space<vmem>>, vector<16x128xf32>,
    return
  }
}

</mosaic_0001>

<llo_original>
// kernel: tpu_custom_call.1
$region0: #{tpu_custom_call.1}
  #allocation0 [shape = 'u32[]', space=smem, size = 0x4, offset = 0x4, fixed_abs, tag = 'smem constant byte address 0x4 - core index']
  #allocation1 [shape = 'u32[72,128]{1,0:T(1,128)}', space=vmem, size = 0x9000, scoped, tag = 'internal scratch']
  %s0 = inlined_call_operand.hbm [shape: f32[16,128], index: 0, kind: input, shape index: {}, may-alias: {0,2}]
  %s1 = inlined_call_operand.hbm [shape: f32[16,128], index: 1, kind: input, shape index: {}, may-alias: {1,3}]
  %s2 = inlined_call_operand.hbm [shape: f32[16,128], index: 2, kind: output, shape index: {0}, may-alias: {0,2}]
  %s3 = inlined_call_operand.hbm [shape: f32[16,128], index: 3, kind: output, shape index: {1}, may-alias: {1,3}]
  %4 = xla_tuple %s2, %s3
  %s5 = sld [smem:[#allocation0]]
  $region34: #{tpu_custom_call.1} parent=0
    _
  %s7 = ssub.s32 1, %s5
  %s8 = scalar_select 0, %s7, %s5
  $region1: #{tpu_custom_call.1} parent=0
    #allocation2 [shape = 'u8[8192]{0}', space=vmem, size = 0x2000, scoped, tag = 'input window, operand 0, single buffered']
    #allocation3 [shape = 's32[1]{0}', space=sflag, size = 0x4, scoped, tag = 'scoped memory for tpu_custom_call.1']
    #allocation4 [shape = 's32[1]{0}', space=sflag, size = 0x4, scoped, tag = 'scoped memory for tpu_custom_call.1']
    #allocation5 [shape = 'u8[8192]{0}', space=vmem, size = 0x2000, scoped, tag = 'input window, operand 1, single buffered']
    #allocation6 [shape = 's32[1]{0}', space=sflag, size = 0x4, scoped, tag = 'scoped memory for tpu_custom_call.1']
    #allocation7 [shape = 'u8[8192]{0}', space=vmem, size = 0x2000, scoped, tag = 'output window, operand 0, single buffered']
    #allocation8 [shape = 'u8[8192]{0}', space=vmem, size = 0x2000, scoped, tag = 'output window, operand 1, single buffered']
    #allocation9 [shape = 's32[1]{0}', space=sflag, size = 0x4, scoped, tag = 'scoped memory for tpu_custom_call.1']
    %9 = vsyncpa [#allocation3], 0
    %10 = vsyncpa [#allocation6], 0
    %11 = vsyncpa [#allocation4], 0
    %12 = vsyncpa [#allocation9], 0
    // Predicated region
    $region2: #{tpu_custom_call.1} parent=1 // pred_check
      _
    $region3: #{tpu_custom_call.1} parent=1 // pred_check_branch
      %14 = sbr.rel (0) target = $region5
    $region4: #{tpu_custom_call.1} parent=1 // pred_region
      %16 = vsyncadd [#allocation3], 0
      %s17 = sshll.u32 %s0, 4
      %s18 = int_to_ptr.hbm [resolvable:$true] %s17
      %s19 = sshll.u32 [#allocation2], 4
      %s20 = int_to_ptr.vmem [resolvable:$true] %s19
      %25 = dma.hbm_to_vmem [thread:$0]  %s18, 256, %s20, [#allocation3], 128, 128, 8
    $region5: #{tpu_custom_call.1} parent=1 // pred_fallthru
      _
    // Predicated region
    $region6: #{tpu_custom_call.1} parent=1 // pred_check
      _
    $region7: #{tpu_custom_call.1} parent=1 // pred_check_branch
      %27 = sbr.rel (0) target = $region9
    $region8: #{tpu_custom_call.1} parent=1 // pred_region
      %29 = vsyncadd [#allocation6], 0
      %s30 = sshll.u32 %s1, 4
      %s31 = int_to_ptr.hbm [resolvable:$true] %s30
      %s32 = sshll.u32 [#allocation5], 4
      %s33 = int_to_ptr.vmem [resolvable:$true] %s32
      %38 = dma.hbm_to_vmem [thread:$0]  %s31, 256, %s33, [#allocation6], 128, 128, 8
    $region9: #{tpu_custom_call.1} parent=1 // pred_fallthru
      _
    // Predicated region
    $region10: #{tpu_custom_call.1} parent=1 // pred_check
      _
    $region11: #{tpu_custom_call.1} parent=1 // pred_check_branch
      %40 = sbr.rel (0) target = $region13
    $region12: #{tpu_custom_call.1} parent=1 // pred_region
      %42 = dma.done [#allocation3], 256
    $region13: #{tpu_custom_call.1} parent=1 // pred_fallthru
      _
    // Predicated region
    $region14: #{tpu_custom_call.1} parent=1 // pred_check
      _
    $region15: #{tpu_custom_call.1} parent=1 // pred_check_branch
      %44 = sbr.rel (0) target = $region17
    $region16: #{tpu_custom_call.1} parent=1 // pred_region
      %46 = dma.done [#allocation6], 256
    $region17: #{tpu_custom_call.1} parent=1 // pred_fallthru
      _
    %v47 = vld [vmem:[#allocation2] sm:$0xff]
    %v48 = vld [vmem:[#allocation2 + $0x8] sm:$0xff]
    %49 = vst [vmem:[#allocation7] sm:$0xff] %v47
    %50 = vst [vmem:[#allocation7 + $0x8] sm:$0xff] %v48
    %v51 = vld [vmem:[#allocation5] sm:$0xff]
    %v52 = vld [vmem:[#allocation5 + $0x8] sm:$0xff]
    %53 = vst [vmem:[#allocation8] sm:$0xff] %v51
    %54 = vst [vmem:[#allocation8 + $0x8] sm:$0xff] %v52
    // Predicated region
    $region18: #{tpu_custom_call.1} parent=1 // pred_check
      _
    $region19: #{tpu_custom_call.1} parent=1 // pred_check_branch
      %56 = sbr.rel (0) target = $region21
    $region20: #{tpu_custom_call.1} parent=1 // pred_region
      %58 = vsyncadd [#allocation4], 0
      %s59 = sshll.u32 [#allocation7], 4
      %s60 = int_to_ptr.vmem [resolvable:$true] %s59
      %s61 = sshll.u32 %s2, 4
      %s62 = int_to_ptr.hbm [resolvable:$true] %s61
      %67 = dma.vmem_to_hbm [thread:$0]  %s60, 256, %s62, [#allocation4], 128, 128, 8
    $region21: #{tpu_custom_call.1} parent=1 // pred_fallthru
      _
    // Predicated region
    $region22: #{tpu_custom_call.1} parent=1 // pred_check
      _
    $region23: #{tpu_custom_call.1} parent=1 // pred_check_branch
      %69 = sbr.rel (0) target = $region25
    $region24: #{tpu_custom_call.1} parent=1 // pred_region
      %71 = vsyncadd [#allocation9], 0
      %s72 = sshll.u32 [#allocation8], 4
      %s73 = int_to_ptr.vmem [resolvable:$true] %s72
      %s74 = sshll.u32 %s3, 4
      %s75 = int_to_ptr.hbm [resolvable:$true] %s74
      %80 = dma.vmem_to_hbm [thread:$0]  %s73, 256, %s75, [#allocation9], 128, 128, 8
    $region25: #{tpu_custom_call.1} parent=1 // pred_fallthru
      _
    // Predicated region
    $region26: #{tpu_custom_call.1} parent=1 // pred_check
      _
    $region27: #{tpu_custom_call.1} parent=1 // pred_check_branch
      %82 = sbr.rel (0) target = $region29
    $region28: #{tpu_custom_call.1} parent=1 // pred_region
      %84 = dma.done [#allocation4], 256
    $region29: #{tpu_custom_call.1} parent=1 // pred_fallthru
      _
    // Predicated region
    $region30: #{tpu_custom_call.1} parent=1 // pred_check
      _
    $region31: #{tpu_custom_call.1} parent=1 // pred_check_branch
      %86 = sbr.rel (0) target = $region33
    $region32: #{tpu_custom_call.1} parent=1 // pred_region
      %88 = dma.done [#allocation9], 256
    $region33: #{tpu_custom_call.1} parent=1 // pred_fallthru
      _
    %89 = vsyncpa [#allocation3], 1
    %90 = vsyncpa [#allocation6], 1
    %91 = vsyncpa [#allocation4], 1
    %92 = vsyncpa [#allocation9], 1

</llo_original>
